<compile_context>
chip_gen: v6e
topology: v6e:2x2x1
jax: 0.10.0
libtpu: 0.0.40
codegen_flags: <defaults>
</compile_context>

<pallas_src>
import jax
import jax.numpy as jnp
from jax.experimental import pallas as pl
from jax.experimental.pallas import tpu as pltpu


def _round_up(x, m):
    return ((x + m - 1) // m) * m


# Keep the fused (resident-W) plan comfortably under v7x's 32 MiB scoped
# default VMEM (64 MiB physical); v5e/v6e have more headroom than this.
_FUSED_VMEM_BUDGET = 24 * 1024 * 1024


# -----------------------------------------------------------------------------
# Fast path: small-N classifier head.
#   grid = (gm,) over M only; W fully resident; single reduction step;
#   no scratch accumulator, no pl.when branches.
# -----------------------------------------------------------------------------
def _fused_head_kernel(temp_ref, x_ref, w_ref, b_ref, o_ref):
    """out = (x @ W + b) / temperature, one M tile per grid step.

    temp_ref : SMEM (1,)            f32  -- temperature (untiled)
    x_ref    : VMEM (tm, D_pad)     bf16
    w_ref    : VMEM (D_pad, N_pad)  bf16 (resident across the whole grid)
    b_ref    : VMEM (1, N_pad)      f32  (resident)
    o_ref    : VMEM (tm, N_pad)     f32
    """
    inv_t = 1.0 / temp_ref[0]
    acc = jnp.dot(x_ref[...], w_ref[...], preferred_element_type=jnp.float32)
    o_ref[...] = ((acc + b_ref[...]) * inv_t).astype(o_ref.dtype)


# -----------------------------------------------------------------------------
# General fallback: large D*N, classic M/N/K tiling with f32 VMEM accumulator.
# -----------------------------------------------------------------------------
def _tiled_head_kernel(temp_ref, x_ref, w_ref, b_ref, o_ref, acc_ref):
    k = pl.program_id(2)

    @pl.when(k == 0)
    def _init():
        acc_ref[...] = jnp.zeros_like(acc_ref)

    acc_ref[...] += jnp.dot(
        x_ref[...], w_ref[...], preferred_element_type=jnp.float32)

    @pl.when(k == pl.num_programs(2) - 1)
    def _epilogue():
        inv_t = 1.0 / temp_ref[0]
        o_ref[...] = ((acc_ref[...] + b_ref[...]) * inv_t).astype(o_ref.dtype)


def prepare_params(w, b):
    """Pad + cast the classifier parameters ONCE (hoisted out of forward).

    w: [D, N] f32  ->  [D_pad, N_pad] bf16   (zero padded, lane-dense N)
    b: [N]    f32  ->  [1, N_pad]     f32
    """
    D, N = w.shape
    D_pad = _round_up(D, 128)
    N_pad = _round_up(N, 128)
    w_p = jnp.zeros((D_pad, N_pad), jnp.bfloat16).at[:D, :N].set(
        w.astype(jnp.bfloat16))
    b_p = jnp.zeros((1, N_pad), jnp.float32).at[0, :N].set(
        b.astype(jnp.float32))
    return w_p, b_p, (D, N)


def model_with_temperature_forward(x_nchw, w_p, b_p, dims, temperature):
    """Pallas equivalent of ModelWithTemperature.forward.

    x_nchw:      [B, C, H, W] f32
    w_p, b_p:    pre-padded / pre-cast params from prepare_params()
    dims:        (D, N) true (unpadded) parameter dims
    temperature: python float / scalar
    """
    D, N = dims
    B = x_nchw.shape[0]
    D_pad, N_pad = w_p.shape

    # M tile: multiple of 16 (bf16 packs 16 sublanes/vreg).  Grow to 256 for
    # large B so gm >= 2 (v7x megacore sharding) and tiles amortize the
    # ~0.35 us per-grid-step overhead.
    tm = 256 if B >= 256 else _round_up(max(B, 1), 16)
    B_pad = _round_up(B, tm)

    # x pad + cast (only if actually needed).
    x_flat = x_nchw.reshape(B, -1)  # matches torch .view(B, -1)
    x_bf16 = x_flat.astype(jnp.bfloat16)
    if (B_pad, D_pad) != (B, D):
        x_p = jnp.zeros((B_pad, D_pad), jnp.bfloat16).at[:B, :D].set(x_bf16)
    else:
        x_p = x_bf16

    temp = jnp.asarray([temperature], dtype=jnp.float32)

    # Scheduler hint on TRUE (unpadded) shapes.
    cost = pl.CostEstimate(
        flops=2 * B * D * N,
        transcendentals=0,
        bytes_accessed=2 * (B * D + D * N) + 4 * (B * N + N),
    )

    # Fused-path VMEM footprint: double-buffered x/out tiles + resident W + b.
    fused_footprint = (2 * tm * D_pad * 2          # x tiles, bf16, 2 bufs
                       + D_pad * N_pad * 2         # resident W, bf16
                       + 2 * tm * N_pad * 4        # out tiles, f32, 2 bufs
                       + 2 * N_pad * 4)            # bias, f32

    if fused_footprint <= _FUSED_VMEM_BUDGET:
        gm = B_pad // tm
        out_padded = pl.pallas_call(
            _fused_head_kernel,
            out_shape=jax.ShapeDtypeStruct((B_pad, N_pad), jnp.float32),
            grid=(gm,),
            in_specs=[
                pl.BlockSpec(memory_space=pltpu.MemorySpace.SMEM),  # temperature
                pl.BlockSpec((tm, D_pad), lambda i: (i, 0)),        # x M-tile
                pl.BlockSpec((D_pad, N_pad), lambda i: (0, 0)),     # W resident
                pl.BlockSpec((1, N_pad), lambda i: (0, 0)),         # bias
            ],
            out_specs=pl.BlockSpec((tm, N_pad), lambda i: (i, 0)),
            compiler_params=pltpu.CompilerParams(
                dimension_semantics=("parallel",)),
            cost_estimate=cost,
        )(temp, x_p, w_p, b_p)
    else:
        # Large-D*N fallback: M/N/K tiling + f32 accumulator, K last.
        tn = 256 if (N_pad % 256 == 0) else 128
        tk = next(t for t in (2048, 1024, 512, 256, 128) if D_pad % t == 0)
        gm, gn, gk = B_pad // tm, N_pad // tn, D_pad // tk
        out_padded = pl.pallas_call(
            _tiled_head_kernel,
            out_shape=jax.ShapeDtypeStruct((B_pad, N_pad), jnp.float32),
            grid=(gm, gn, gk),
            in_specs=[
                pl.BlockSpec(memory_space=pltpu.MemorySpace.SMEM),
                pl.BlockSpec((tm, tk), lambda i, j, k: (i, k)),
                pl.BlockSpec((tk, tn), lambda i, j, k: (k, j)),
                pl.BlockSpec((1, tn), lambda i, j, k: (0, j)),
            ],
            out_specs=pl.BlockSpec((tm, tn), lambda i, j, k: (i, j)),
            scratch_shapes=[pltpu.VMEM((tm, tn), jnp.float32)],
            compiler_params=pltpu.CompilerParams(
                dimension_semantics=("parallel", "parallel", "arbitrary")),
            cost_estimate=cost,
        )(temp, x_p, w_p, b_p)

    return out_padded[:B, :N]


if __name__ == "__main__":
    # Small shapes consistent with an NCHW classification model.
    B, C, H, W_sp = 2, 4, 16, 16
    NUM_CLASSES = 10
    D = C * H * W_sp

    key = jax.random.PRNGKey(0)
    kx, kw, kb = jax.random.split(key, 3)

    x = jax.random.normal(kx, (B, C, H, W_sp), dtype=jnp.float32)
    # Deterministic synthetic "model" parameters (linear classifier).
    w = jax.random.normal(kw, (D, NUM_CLASSES), dtype=jnp.float32) * 0.02
    b = jax.random.normal(kb, (NUM_CLASSES,), dtype=jnp.float32) * 0.01

    # ModelWithTemperature.__init__ sets temperature = 1.0; use a non-trivial
    # value so the scaling path is actually exercised.
    temperature = 1.5
    # TODO(synk): set_temperature / NLL-ECE grid-search calibration is a
    # host-side optimization loop, not part of the forward pass kernel.

    # Parameter pad + cast hoisted out of the per-call forward path.
    w_p, b_p, dims = prepare_params(w, b)

    out = model_with_temperature_forward(x, w_p, b_p, dims, temperature)
    jax.block_until_ready(out)

    # Reference 1: identical bf16-quantized inputs, f32 math (tight kernel check).
    xq = x.reshape(B, D).astype(jnp.bfloat16).astype(jnp.float32)
    wq = w.astype(jnp.bfloat16).astype(jnp.float32)
    ref_q = (xq @ wq + b) / temperature
    assert jnp.allclose(out, ref_q, atol=5e-3, rtol=5e-3), \
        "mismatch vs bf16-quantized reference"

    # Reference 2: original f32 module semantics (loose check; inputs are
    # quantized to bf16 inside the kernel path).
    ref = (x.reshape(B, D) @ w + b) / temperature
    assert jnp.allclose(out, ref, atol=5e-2, rtol=5e-2), \
        "mismatch vs f32 reference"

    print("KERNEL_OK")
</pallas_src>

<mosaic_0001>
module attributes {stable_mosaic.version = 11 : i64} {
  func.func @_fused_head_kernel(%arg0: i32, %arg1: memref<1xf32, #tpu.memory_space<smem>>, %arg2: memref<16x1024xbf16, #tpu.memory_space<vmem>>, %arg3: memref<1024x128xbf16, #tpu.memory_space<vmem>>, %arg4: memref<1x128xf32, #tpu.memory_space<vmem>>, %arg5: memref<16x128xf32, #tpu.memory_space<vmem>>) attributes {dimension_semantics = [#tpu.dimension_semantics<parallel>], iteration_bounds = array<i64: 1>, scalar_prefetch = 0 : i64, scratch_operands = 0 : i64, tpu.core_type = #tpu.core_type<tc>, window_params = [{transform_indices = @transform_0, window_bounds = array<i64: 1>}, {transform_indices = @transform_1, window_bounds = array<i64: 16, 1024>}, {pipeline_mode = #tpu.pipeline_mode<synchronous>, transform_indices = @transform_2, window_bounds = array<i64: 1024, 128>}, {pipeline_mode = #tpu.pipeline_mode<synchronous>, transform_indices = @transform_3, window_bounds = array<i64: 1, 128>}, {transform_indices = @transform_4, window_bounds = array<i64: 16, 128>}]} {
    %c0 = arith.constant 0 : index
    %0 = memref.load %arg1[%c0] : memref<1xf32, #tpu.memory_space<smem>>
    %cst = arith.constant 1.000000e+00 : f32
    %1 = arith.divf %cst, %0 : f32
    %c0_0 = arith.constant 0 : index
    %c0_1 = arith.constant 0 : index
    %2 = vector.load %arg2[%c0_0, %c0_1] : memref<16x1024xbf16, #tpu.memory_space<vmem>>, vector<16x1024xbf16>
    %c0_2 = arith.constant 0 : index
    %c0_3 = arith.constant 0 : index
    %3 = vector.load %arg3[%c0_2, %c0_3] : memref<1024x128xbf16, #tpu.memory_space<vmem>>, vector<1024x128xbf16>
    %cst_4 = arith.constant dense<0.000000e+00> : vector<16x128xf32>
    %4 = tpu.matmul %2, %3, %cst_4 {dimension_numbers = #tpu.dot_dimension_numbers<[1], [0], [0], [1], [0, 0, 1, 1], [], []>} : vector<16x1024xbf16>, vector<1024x128xbf16>, vector<16x128xf32> -> vector<16x128xf32>
    %c0_5 = arith.constant 0 : index
    %c0_6 = arith.constant 0 : index
    %5 = vector.load %arg4[%c0_5, %c0_6] : memref<1x128xf32, #tpu.memory_space<vmem>>, vector<1x128xf32>
    %6 = vector.broadcast %5 : vector<1x128xf32> to vector<16x128xf32>
    %7 = arith.addf %4, %6 : vector<16x128xf32>
    %8 = vector.broadcast %1 : f32 to vector<16x128xf32>
    %9 = arith.mulf %7, %8 : vector<16x128xf32>
    %c0_7 = arith.constant 0 : index
    %c0_8 = arith.constant 0 : index
    %10 = vector.load %arg5[%c0_7, %c0_8] : memref<16x128xf32, #tpu.memory_space<vmem>>, vector<16x128xf32>
    tpu.vector_store %arg5[%c0_7, %c0_8], %9 {strides = array<i32>} : memref<16x128xf32, #tpu.memory_space<vmem>>, vector<16x128xf32>,
    return
  }
  func.func @transform_0(%arg0: i32) -> i32 {
    %c0_i32 = arith.constant 0 : i32
    %c0_i32_0 = arith.constant 0 : i32
    return %c0_i32 : i32
  }
  func.func @transform_1(%arg0: i32) -> (i32, i32) {
    %c0_i32 = arith.constant 0 : i32
    %c0_i32_0 = arith.constant 0 : i32
    return %arg0, %c0_i32 : i32, i32
  }
  func.func @transform_2(%arg0: i32) -> (i32, i32) {
    %c0_i32 = arith.constant 0 : i32
    %c0_i32_0 = arith.constant 0 : i32
    %c0_i32_1 = arith.constant 0 : i32
    return %c0_i32, %c0_i32_0 : i32, i32
  }
  func.func @transform_3(%arg0: i32) -> (i32, i32) {
    %c0_i32 = arith.constant 0 : i32
    %c0_i32_0 = arith.constant 0 : i32
    %c0_i32_1 = arith.constant 0 : i32
    return %c0_i32, %c0_i32_0 : i32, i32
  }
  func.func @transform_4(%arg0: i32) -> (i32, i32) {
    %c0_i32 = arith.constant 0 : i32
    %c0_i32_0 = arith.constant 0 : i32
    return %arg0, %c0_i32 : i32, i32
  }
}

</mosaic_0001>

<llo_original>
// kernel: tpu_custom_call.1
$region0: #{tpu_custom_call.1}
  #allocation0 [shape = 'u32[]', space=smem, size = 0x4, offset = 0x4, fixed_abs, tag = 'smem constant byte address 0x4 - core index']
  #allocation1 [shape = 'u32[144,128]{1,0:T(1,128)}', space=vmem, size = 0x12000, scoped, tag = 'internal scratch']
  #allocation2 [shape = 'f32[1]{0:T(128)S(6)}', space=smem, size = 0x200, scoped, tag = 'scoped memory for tpu_custom_call.1']
  %s0 = inlined_call_operand.<no memory space> [shape: f32[1], index: 0, kind: input, shape index: {}]
  %s1 = inlined_call_operand.hbm [shape: bf16[16,1024], index: 1, kind: input, shape index: {}]
  %s2 = inlined_call_operand.hbm [shape: bf16[1024,128], index: 2, kind: input, shape index: {}]
  %s3 = inlined_call_operand.vmem [shape: f32[1,128], index: 3, kind: input, shape index: {}]
  %s4 = inlined_call_operand.hbm [shape: f32[16,128], index: 4, kind: output, shape index: {}]
  %s5 = sld [smem:[#allocation0]]
  $region34: #{tpu_custom_call.1} parent=0
    _
  %s7 = ssub.s32 1, %s5
  %s8 = scalar_select 0, %s7, %s5
  %9 = sst [smem:[#allocation2]] %s0
  $region1: #{tpu_custom_call.1} parent=0
    #allocation3 [shape = 'u8[32768]{0}', space=vmem, size = 0x8000, scoped, tag = 'input window, operand 1, single buffered']
    #allocation4 [shape = 's32[1]{0}', space=sflag, size = 0x4, scoped, tag = 'scoped memory for tpu_custom_call.1']
    #allocation5 [shape = 's32[1]{0}', space=sflag, size = 0x4, scoped, tag = 'scoped memory for tpu_custom_call.1']
    #allocation6 [shape = 'u8[262144]{0}', space=vmem, size = 0x40000, scoped, tag = 'input window, operand 2, single buffered']
    #allocation7 [shape = 's32[1]{0}', space=sflag, size = 0x4, scoped, tag = 'scoped memory for tpu_custom_call.1']
    #allocation8 [shape = 'u8[8192]{0}', space=vmem, size = 0x2000, scoped, tag = 'output window, operand 0, single buffered']
    %10 = vsyncpa [#allocation4], 0
    %11 = vsyncpa [#allocation7], 0
    %12 = vsyncpa [#allocation5], 0
    // Predicated region
    $region2: #{tpu_custom_call.1} parent=1 // pred_check
      _
    $region3: #{tpu_custom_call.1} parent=1 // pred_check_branch
      %14 = sbr.rel (0) target = $region5
    $region4: #{tpu_custom_call.1} parent=1 // pred_region
      _
    $region5: #{tpu_custom_call.1} parent=1 // pred_fallthru
      _
    // Predicated region
    $region6: #{tpu_custom_call.1} parent=1 // pred_check
      _
    $region7: #{tpu_custom_call.1} parent=1 // pred_check_branch
      %16 = sbr.rel (0) target = $region9
    $region8: #{tpu_custom_call.1} parent=1 // pred_region
      %s18 = ssub.s32 1024, 1024
      %19 = vsyncadd [#allocation4], %s18
      %s20 = sshll.u32 [#allocation3], 4
      %s21 = int_to_ptr.vmem [resolvable:$true] %s20
      %26 = dma.hbm_to_vmem [thread:$0]  %s1, 1024, %s21, [#allocation4], 512, 512, 32
    $region9: #{tpu_custom_call.1} parent=1 // pred_fallthru
      _
    // Predicated region
    $region10: #{tpu_custom_call.1} parent=1 // pred_check
      _
    $region11: #{tpu_custom_call.1} parent=1 // pred_check_branch
      %28 = sbr.rel (0) target = $region13
    $region12: #{tpu_custom_call.1} parent=1 // pred_region
      %s30 = ssub.s32 8192, 8192
      %31 = vsyncadd [#allocation7], %s30
      %s32 = sshll.u32 [#allocation6], 4
      %s33 = int_to_ptr.vmem [resolvable:$true] %s32
      %38 = dma.hbm_to_vmem [thread:$0]  %s2, 8192, %s33, [#allocation7], 64, 64, 4
    $region13: #{tpu_custom_call.1} parent=1 // pred_fallthru
      _
    // Predicated region
    $region14: #{tpu_custom_call.1} parent=1 // pred_check
      _
    $region15: #{tpu_custom_call.1} parent=1 // pred_check_branch
      %40 = sbr.rel (0) target = $region17
    $region16: #{tpu_custom_call.1} parent=1 // pred_region
      _
    $region17: #{tpu_custom_call.1} parent=1 // pred_fallthru
      _
    // Predicated region
    $region18: #{tpu_custom_call.1} parent=1 // pred_check
      _
    $region19: #{tpu_custom_call.1} parent=1 // pred_check_branch
      %42 = sbr.rel (0) target = $region21
    $region20: #{tpu_custom_call.1} parent=1 // pred_region
      %43 = dma.done [#allocation4], 1024
    $region21: #{tpu_custom_call.1} parent=1 // pred_fallthru
      _
    // Predicated region
    $region22: #{tpu_custom_call.1} parent=1 // pred_check
      _
    $region23: #{tpu_custom_call.1} parent=1 // pred_check_branch
      %45 = sbr.rel (0) target = $region25
    $region24: #{tpu_custom_call.1} parent=1 // pred_region
      %46 = dma.done [#allocation7], 8192
    $region25: #{tpu_custom_call.1} parent=1 // pred_fallthru
      _
    %s48 = sld [smem:[#allocation2]]
    %v49 = vstv %s48
    %v50 = vrcp.pop %v49
    %s51 = vtos %v50
    %v52 = vld [vmem:[#allocation3] sm:$0xff]
    %v53 = vld [vmem:[#allocation3 + $0x8] sm:$0xff]
    %v54 = vld [vmem:[#allocation3 + $0x10] sm:$0xff]
    %v55 = vld [vmem:[#allocation3 + $0x18] sm:$0xff]
    %v56 = vld [vmem:[#allocation3 + $0x20] sm:$0xff]
    %v57 = vld [vmem:[#allocation3 + $0x28] sm:$0xff]
    %v58 = vld [vmem:[#allocation3 + $0x30] sm:$0xff]
    %v59 = vld [vmem:[#allocation3 + $0x38] sm:$0xff]
    %v60 = vld [vmem:[#allocation6] sm:$0xf]
    %v61 = vld [vmem:[#allocation6 + $0x4] sm:$0xf]
    %v62 = vld [vmem:[#allocation6 + $0x8] sm:$0xf]
    %v63 = vld [vmem:[#allocation6 + $0xc] sm:$0xf]
    %v64 = vld [vmem:[#allocation6 + $0x10] sm:$0xf]
    %v65 = vld [vmem:[#allocation6 + $0x14] sm:$0xf]
    %v66 = vld [vmem:[#allocation6 + $0x18] sm:$0xf]
    %v67 = vld [vmem:[#allocation6 + $0x1c] sm:$0xf]
    %v68 = vld [vmem:[#allocation6 + $0x20] sm:$0xf]
    %v69 = vld [vmem:[#allocation6 + $0x24] sm:$0xf]
    %v70 = vld [vmem:[#allocation6 + $0x28] sm:$0xf]
    %v71 = vld [vmem:[#allocation6 + $0x2c] sm:$0xf]
    %v72 = vld [vmem:[#allocation6 + $0x30] sm:$0xf]
    %v73 = vld [vmem:[#allocation6 + $0x34] sm:$0xf]
    %v74 = vld [vmem:[#allocation6 + $0x38] sm:$0xf]
    %v75 = vld [vmem:[#allocation6 + $0x3c] sm:$0xf]
    %v76 = vld [vmem:[#allocation6 + $0x40] sm:$0xf]
    %v77 = vld [vmem:[#allocation6 + $0x44] sm:$0xf]
    %v78 = vld [vmem:[#allocation6 + $0x48] sm:$0xf]
    %v79 = vld [vmem:[#allocation6 + $0x4c] sm:$0xf]
    %v80 = vld [vmem:[#allocation6 + $0x50] sm:$0xf]
    %v81 = vld [vmem:[#allocation6 + $0x54] sm:$0xf]
    %v82 = vld [vmem:[#allocation6 + $0x58] sm:$0xf]
    %v83 = vld [vmem:[#allocation6 + $0x5c] sm:$0xf]
    %v84 = vld [vmem:[#allocation6 + $0x60] sm:$0xf]
    %v85 = vld [vmem:[#allocation6 + $0x64] sm:$0xf]
    %v86 = vld [vmem:[#allocation6 + $0x68] sm:$0xf]
    %v87 = vld [vmem:[#allocation6 + $0x6c] sm:$0xf]
    %v88 = vld [vmem:[#allocation6 + $0x70] sm:$0xf]
    %v89 = vld [vmem:[#allocation6 + $0x74] sm:$0xf]
    %v90 = vld [vmem:[#allocation6 + $0x78] sm:$0xf]
    %v91 = vld [vmem:[#allocation6 + $0x7c] sm:$0xf]
    %v92 = vld [vmem:[#allocation6 + $0x80] sm:$0xf]
    %v93 = vld [vmem:[#allocation6 + $0x84] sm:$0xf]
    %v94 = vld [vmem:[#allocation6 + $0x88] sm:$0xf]
    %v95 = vld [vmem:[#allocation6 + $0x8c] sm:$0xf]
    %v96 = vld [vmem:[#allocation6 + $0x90] sm:$0xf]
    %v97 = vld [vmem:[#allocation6 + $0x94] sm:$0xf]
    %v98 = vld [vmem:[#allocation6 + $0x98] sm:$0xf]
    %v99 = vld [vmem:[#allocation6 + $0x9c] sm:$0xf]
    %v100 = vld [vmem:[#allocation6 + $0xa0] sm:$0xf]
    %v101 = vld [vmem:[#allocation6 + $0xa4] sm:$0xf]
    %v102 = vld [vmem:[#allocation6 + $0xa8] sm:$0xf]
    %v103 = vld [vmem:[#allocation6 + $0xac] sm:$0xf]
    %v104 = vld [vmem:[#allocation6 + $0xb0] sm:$0xf]
    %v105 = vld [vmem:[#allocation6 + $0xb4] sm:$0xf]
    %v106 = vld [vmem:[#allocation6 + $0xb8] sm:$0xf]
    %v107 = vld [vmem:[#allocation6 + $0xbc] sm:$0xf]
    %v108 = vld [vmem:[#allocation6 + $0xc0] sm:$0xf]
    %v109 = vld [vmem:[#allocation6 + $0xc4] sm:$0xf]
    %v110 = vld [vmem:[#allocation6 + $0xc8] sm:$0xf]
    %v111 = vld [vmem:[#allocation6 + $0xcc] sm:$0xf]
    %v112 = vld [vmem:[#allocation6 + $0xd0] sm:$0xf]
    %v113 = vld [vmem:[#allocation6 + $0xd4] sm:$0xf]
    %v114 = vld [vmem:[#allocation6 + $0xd8] sm:$0xf]
    %v115 = vld [vmem:[#allocation6 + $0xdc] sm:$0xf]
    %v116 = vld [vmem:[#allocation6 + $0xe0] sm:$0xf]
    %v117 = vld [vmem:[#allocation6 + $0xe4] sm:$0xf]
    %v118 = vld [vmem:[#allocation6 + $0xe8] sm:$0xf]
    %v119 = vld [vmem:[#allocation6 + $0xec] sm:$0xf]
    %v120 = vld [vmem:[#allocation6 + $0xf0] sm:$0xf]
    %v121 = vld [vmem:[#allocation6 + $0xf4] sm:$0xf]
    %v122 = vld [vmem:[#allocation6 + $0xf8] sm:$0xf]
    %v123 = vld [vmem:[#allocation6 + $0xfc] sm:$0xf]
    %v124 = vld [vmem:[#allocation6 + $0x100] sm:$0xf]
    %v125 = vld [vmem:[#allocation6 + $0x104] sm:$0xf]
    %v126 = vld [vmem:[#allocation6 + $0x108] sm:$0xf]
    %v127 = vld [vmem:[#allocation6 + $0x10c] sm:$0xf]
    %v128 = vld [vmem:[#allocation6 + $0x110] sm:$0xf]
    %v129 = vld [vmem:[#allocation6 + $0x114] sm:$0xf]
    %v130 = vld [vmem:[#allocation6 + $0x118] sm:$0xf]
    %v131 = vld [vmem:[#allocation6 + $0x11c] sm:$0xf]
    %v132 = vld [vmem:[#allocation6 + $0x120] sm:$0xf]
    %v133 = vld [vmem:[#allocation6 + $0x124] sm:$0xf]
    %v134 = vld [vmem:[#allocation6 + $0x128] sm:$0xf]
    %v135 = vld [vmem:[#allocation6 + $0x12c] sm:$0xf]
    %v136 = vld [vmem:[#allocation6 + $0x130] sm:$0xf]
    %v137 = vld [vmem:[#allocation6 + $0x134] sm:$0xf]
    %v138 = vld [vmem:[#allocation6 + $0x138] sm:$0xf]
    %v139 = vld [vmem:[#allocation6 + $0x13c] sm:$0xf]
    %v140 = vld [vmem:[#allocation6 + $0x140] sm:$0xf]
    %v141 = vld [vmem:[#allocation6 + $0x144] sm:$0xf]
    %v142 = vld [vmem:[#allocation6 + $0x148] sm:$0xf]
    %v143 = vld [vmem:[#allocation6 + $0x14c] sm:$0xf]
    %v144 = vld [vmem:[#allocation6 + $0x150] sm:$0xf]
    %v145 = vld [vmem:[#allocation6 + $0x154] sm:$0xf]
    %v146 = vld [vmem:[#allocation6 + $0x158] sm:$0xf]
    %v147 = vld [vmem:[#allocation6 + $0x15c] sm:$0xf]
    %v148 = vld [vmem:[#allocation6 + $0x160] sm:$0xf]
    %v149 = vld [vmem:[#allocation6 + $0x164] sm:$0xf]
    %v150 = vld [vmem:[#allocation6 + $0x168] sm:$0xf]
    %v151 = vld [vmem:[#allocation6 + $0x16c] sm:$0xf]
    %v152 = vld [vmem:[#allocation6 + $0x170] sm:$0xf]
    %v153 = vld [vmem:[#allocation6 + $0x174] sm:$0xf]
    %v154 = vld [vmem:[#allocation6 + $0x178] sm:$0xf]
    %v155 = vld [vmem:[#allocation6 + $0x17c] sm:$0xf]
    %v156 = vld [vmem:[#allocation6 + $0x180] sm:$0xf]
    %v157 = vld [vmem:[#allocation6 + $0x184] sm:$0xf]
    %v158 = vld [vmem:[#allocation6 + $0x188] sm:$0xf]
    %v159 = vld [vmem:[#allocation6 + $0x18c] sm:$0xf]
    %v160 = vld [vmem:[#allocation6 + $0x190] sm:$0xf]
    %v161 = vld [vmem:[#allocation6 + $0x194] sm:$0xf]
    %v162 = vld [vmem:[#allocation6 + $0x198] sm:$0xf]
    %v163 = vld [vmem:[#allocation6 + $0x19c] sm:$0xf]
    %v164 = vld [vmem:[#allocation6 + $0x1a0] sm:$0xf]
    %v165 = vld [vmem:[#allocation6 + $0x1a4] sm:$0xf]
    %v166 = vld [vmem:[#allocation6 + $0x1a8] sm:$0xf]
    %v167 = vld [vmem:[#allocation6 + $0x1ac] sm:$0xf]
    %v168 = vld [vmem:[#allocation6 + $0x1b0] sm:$0xf]
    %v169 = vld [vmem:[#allocation6 + $0x1b4] sm:$0xf]
    %v170 = vld [vmem:[#allocation6 + $0x1b8] sm:$0xf]
    %v171 = vld [vmem:[#allocation6 + $0x1bc] sm:$0xf]
    %v172 = vld [vmem:[#allocation6 + $0x1c0] sm:$0xf]
    %v173 = vld [vmem:[#allocation6 + $0x1c4] sm:$0xf]
    %v174 = vld [vmem:[#allocation6 + $0x1c8] sm:$0xf]
    %v175 = vld [vmem:[#allocation6 + $0x1cc] sm:$0xf]
    %v176 = vld [vmem:[#allocation6 + $0x1d0] sm:$0xf]
    %v177 = vld [vmem:[#allocation6 + $0x1d4] sm:$0xf]
    %v178 = vld [vmem:[#allocation6 + $0x1d8] sm:$0xf]
    %v179 = vld [vmem:[#allocation6 + $0x1dc] sm:$0xf]
    %v180 = vld [vmem:[#allocation6 + $0x1e0] sm:$0xf]
    %v181 = vld [vmem:[#allocation6 + $0x1e4] sm:$0xf]
    %v182 = vld [vmem:[#allocation6 + $0x1e8] sm:$0xf]
    %v183 = vld [vmem:[#allocation6 + $0x1ec] sm:$0xf]
    %v184 = vld [vmem:[#allocation6 + $0x1f0] sm:$0xf]
    %v185 = vld [vmem:[#allocation6 + $0x1f4] sm:$0xf]
    %v186 = vld [vmem:[#allocation6 + $0x1f8] sm:$0xf]
    %v187 = vld [vmem:[#allocation6 + $0x1fc] sm:$0xf]
    %v188 = vld [vmem:[%s3] sm:$0x1]
    %v190 = vlaneseq
    %v191 = vshrl.u32 %v190, 7
    %v192 = vsub.s32 0, %v191
    %v193 = vrot.slane %v188, %v192
    %v203 = vunpack.c.l.b16 %v52
    %v204 = vunpack.c.h.b16 %v52
    %v205 = vunpack.c.l.b16 %v53
    %v206 = vunpack.c.h.b16 %v53
    %v207 = vunpack.c.l.b16 %v54
    %v208 = vunpack.c.h.b16 %v54
    %v209 = vunpack.c.l.b16 %v55
    %v210 = vunpack.c.h.b16 %v55
    %v211 = vunpack.c.l.b16 %v56
    %v212 = vunpack.c.h.b16 %v56
    %v213 = vunpack.c.l.b16 %v57
    %v214 = vunpack.c.h.b16 %v57
    %v215 = vunpack.c.l.b16 %v58
    %v216 = vunpack.c.h.b16 %v58
    %v217 = vunpack.c.l.b16 %v59
    %v218 = vunpack.c.h.b16 %v59
    %v219 = vpack.c.b16 %v211, %v203
    %v220 = vpack.c.b16 %v212, %v204
    %v221 = vpack.c.b16 %v213, %v205
    %v222 = vpack.c.b16 %v214, %v206
    %v223 = vpack.c.b16 %v215, %v207
    %v224 = vpack.c.b16 %v216, %v208
    %v225 = vpack.c.b16 %v217, %v209
    %v226 = vpack.c.b16 %v218, %v210
    %v363 = vunpack.c.l.b16 %v60
    %v364 = vunpack.c.l.b16 %v61
    %v365 = vunpack.c.l.b16 %v62
    %v366 = vunpack.c.l.b16 %v63
    %v367 = vunpack.c.l.b16 %v64
    %v368 = vunpack.c.l.b16 %v65
    %v369 = vunpack.c.l.b16 %v66
    %v370 = vunpack.c.l.b16 %v67
    %v371 = vunpack.c.l.b16 %v68
    %v372 = vunpack.c.l.b16 %v69
    %v373 = vunpack.c.l.b16 %v70
    %v374 = vunpack.c.l.b16 %v71
    %v375 = vunpack.c.l.b16 %v72
    %v376 = vunpack.c.l.b16 %v73
    %v377 = vunpack.c.l.b16 %v74
    %v378 = vunpack.c.l.b16 %v75
    %v379 = vunpack.c.l.b16 %v76
    %v380 = vunpack.c.l.b16 %v77
    %v381 = vunpack.c.l.b16 %v78
    %v382 = vunpack.c.l.b16 %v79
    %v383 = vunpack.c.l.b16 %v80
    %v384 = vunpack.c.l.b16 %v81
    %v385 = vunpack.c.l.b16 %v82
    %v386 = vunpack.c.l.b16 %v83
    %v387 = vunpack.c.l.b16 %v84
    %v388 = vunpack.c.l.b16 %v85
    %v389 = vunpack.c.l.b16 %v86
    %v390 = vunpack.c.l.b16 %v87
    %v391 = vunpack.c.l.b16 %v88
    %v392 = vunpack.c.l.b16 %v89
    %v393 = vunpack.c.l.b16 %v90
    %v394 = vunpack.c.l.b16 %v91
    %v395 = vunpack.c.l.b16 %v92
    %v396 = vunpack.c.l.b16 %v93
    %v397 = vunpack.c.l.b16 %v94
    %v398 = vunpack.c.l.b16 %v95
    %v399 = vunpack.c.l.b16 %v96
    %v400 = vunpack.c.l.b16 %v97
    %v401 = vunpack.c.l.b16 %v98
    %v402 = vunpack.c.l.b16 %v99
    %v403 = vunpack.c.l.b16 %v100
    %v404 = vunpack.c.l.b16 %v101
    %v405 = vunpack.c.l.b16 %v102
    %v406 = vunpack.c.l.b16 %v103
    %v407 = vunpack.c.l.b16 %v104
    %v408 = vunpack.c.l.b16 %v105
    %v409 = vunpack.c.l.b16 %v106
    %v410 = vunpack.c.l.b16 %v107
    %v411 = vunpack.c.l.b16 %v108
    %v412 = vunpack.c.l.b16 %v109
    %v413 = vunpack.c.l.b16 %v110
    %v414 = vunpack.c.l.b16 %v111
    %v415 = vunpack.c.l.b16 %v112
    %v416 = vunpack.c.l.b16 %v113
    %v417 = vunpack.c.l.b16 %v114
    %v418 = vunpack.c.l.b16 %v115
    %v419 = vunpack.c.l.b16 %v116
    %v420 = vunpack.c.l.b16 %v117
    %v421 = vunpack.c.l.b16 %v118
    %v422 = vunpack.c.l.b16 %v119
    %v423 = vunpack.c.l.b16 %v120
    %v424 = vunpack.c.l.b16 %v121
    %v425 = vunpack.c.l.b16 %v122
    %v426 = vunpack.c.l.b16 %v123
    %v427 = vunpack.c.l.b16 %v124
    %v428 = vunpack.c.l.b16 %v125
    %v429 = vunpack.c.l.b16 %v126
    %v430 = vunpack.c.l.b16 %v127
    %v431 = vunpack.c.l.b16 %v128
    %v432 = vunpack.c.l.b16 %v129
    %v433 = vunpack.c.l.b16 %v130
    %v434 = vunpack.c.l.b16 %v131
    %v435 = vunpack.c.l.b16 %v132
    %v436 = vunpack.c.l.b16 %v133
    %v437 = vunpack.c.l.b16 %v134
    %v438 = vunpack.c.l.b16 %v135
    %v439 = vunpack.c.l.b16 %v136
    %v440 = vunpack.c.l.b16 %v137
    %v441 = vunpack.c.l.b16 %v138
    %v442 = vunpack.c.l.b16 %v139
    %v443 = vunpack.c.l.b16 %v140
    %v444 = vunpack.c.l.b16 %v141
    %v445 = vunpack.c.l.b16 %v142
    %v446 = vunpack.c.l.b16 %v143
    %v447 = vunpack.c.l.b16 %v144
    %v448 = vunpack.c.l.b16 %v145
    %v449 = vunpack.c.l.b16 %v146
    %v450 = vunpack.c.l.b16 %v147
    %v451 = vunpack.c.l.b16 %v148
    %v452 = vunpack.c.l.b16 %v149
    %v453 = vunpack.c.l.b16 %v150
    %v454 = vunpack.c.l.b16 %v151
    %v455 = vunpack.c.l.b16 %v152
    %v456 = vunpack.c.l.b16 %v153
    %v457 = vunpack.c.l.b16 %v154
    %v458 = vunpack.c.l.b16 %v155
    %v459 = vunpack.c.l.b16 %v156
    %v460 = vunpack.c.l.b16 %v157
    %v461 = vunpack.c.l.b16 %v158
    %v462 = vunpack.c.l.b16 %v159
    %v463 = vunpack.c.l.b16 %v160
    %v464 = vunpack.c.l.b16 %v161
    %v465 = vunpack.c.l.b16 %v162
    %v466 = vunpack.c.l.b16 %v163
    %v467 = vunpack.c.l.b16 %v164
    %v468 = vunpack.c.l.b16 %v165
    %v469 = vunpack.c.l.b16 %v166
    %v470 = vunpack.c.l.b16 %v167
    %v471 = vunpack.c.l.b16 %v168
    %v472 = vunpack.c.l.b16 %v169
    %v473 = vunpack.c.l.b16 %v170
    %v474 = vunpack.c.l.b16 %v171
    %v475 = vunpack.c.l.b16 %v172
    %v476 = vunpack.c.l.b16 %v173
    %v477 = vunpack.c.l.b16 %v174
    %v478 = vunpack.c.l.b16 %v175
    %v479 = vunpack.c.l.b16 %v176
    %v480 = vunpack.c.l.b16 %v177
    %v481 = vunpack.c.l.b16 %v178
    %v482 = vunpack.c.l.b16 %v179
    %v483 = vunpack.c.l.b16 %v180
    %v484 = vunpack.c.l.b16 %v181
    %v485 = vunpack.c.l.b16 %v182
    %v486 = vunpack.c.l.b16 %v183
    %v487 = vunpack.c.l.b16 %v184
    %v488 = vunpack.c.l.b16 %v185
    %v489 = vunpack.c.l.b16 %v186
    %v490 = vunpack.c.l.b16 %v187
    %v491 = vpack.c.b16 %v364, %v363
    %v492 = vpack.c.b16 %v366, %v365
    %v493 = vpack.c.b16 %v368, %v367
    %v494 = vpack.c.b16 %v370, %v369
    %v495 = vpack.c.b16 %v372, %v371
    %v496 = vpack.c.b16 %v374, %v373
    %v497 = vpack.c.b16 %v376, %v375
    %v498 = vpack.c.b16 %v378, %v377
    %v499 = vpack.c.b16 %v380, %v379
    %v500 = vpack.c.b16 %v382, %v381
    %v501 = vpack.c.b16 %v384, %v383
    %v502 = vpack.c.b16 %v386, %v385
    %v503 = vpack.c.b16 %v388, %v387
    %v504 = vpack.c.b16 %v390, %v389
    %v505 = vpack.c.b16 %v392, %v391
    %v506 = vpack.c.b16 %v394, %v393
    %v507 = vpack.c.b16 %v396, %v395
    %v508 = vpack.c.b16 %v398, %v397
    %v509 = vpack.c.b16 %v400, %v399
    %v510 = vpack.c.b16 %v402, %v401
    %v511 = vpack.c.b16 %v404, %v403
    %v512 = vpack.c.b16 %v406, %v405
    %v513 = vpack.c.b16 %v408, %v407
    %v514 = vpack.c.b16 %v410, %v409
    %v515 = vpack.c.b16 %v412, %v411
    %v516 = vpack.c.b16 %v414, %v413
    %v517 = vpack.c.b16 %v416, %v415
    %v518 = vpack.c.b16 %v418, %v417
    %v519 = vpack.c.b16 %v420, %v419
    %v520 = vpack.c.b16 %v422, %v421
    %v521 = vpack.c.b16 %v424, %v423
    %v522 = vpack.c.b16 %v426, %v425
    %v523 = vpack.c.b16 %v428, %v427
    %v524 = vpack.c.b16 %v430, %v429
    %v525 = vpack.c.b16 %v432, %v431
    %v526 = vpack.c.b16 %v434, %v433
    %v527 = vpack.c.b16 %v436, %v435
    %v528 = vpack.c.b16 %v438, %v437
    %v529 = vpack.c.b16 %v440, %v439
    %v530 = vpack.c.b16 %v442, %v441
    %v531 = vpack.c.b16 %v444, %v443
    %v532 = vpack.c.b16 %v446, %v445
    %v533 = vpack.c.b16 %v448, %v447
    %v534 = vpack.c.b16 %v450, %v449
    %v535 = vpack.c.b16 %v452, %v451
    %v536 = vpack.c.b16 %v454, %v453
    %v537 = vpack.c.b16 %v456, %v455
    %v538 = vpack.c.b16 %v458, %v457
    %v539 = vpack.c.b16 %v460, %v459
    %v540 = vpack.c.b16 %v462, %v461
    %v541 = vpack.c.b16 %v464, %v463
    %v542 = vpack.c.b16 %v466, %v465
    %v543 = vpack.c.b16 %v468, %v467
    %v544 = vpack.c.b16 %v470, %v469
    %v545 = vpack.c.b16 %v472, %v471
    %v546 = vpack.c.b16 %v474, %v473
    %v547 = vpack.c.b16 %v476, %v475
    %v548 = vpack.c.b16 %v478, %v477
    %v549 = vpack.c.b16 %v480, %v479
    %v550 = vpack.c.b16 %v482, %v481
    %v551 = vpack.c.b16 %v484, %v483
    %v552 = vpack.c.b16 %v486, %v485
    %v553 = vpack.c.b16 %v488, %v487
    %v554 = vpack.c.b16 %v490, %v489
    %619 = vmatprep.subr.bf16.mxu0 0
    %620 = vmatpush1.bf16.msra.mxu0 %v498
    %621 = vmatprep.subr.bf16.mxu0 0
    %622 = vmatpush1.bf16.msra.mxu0 %v497
    %623 = vmatprep.subr.bf16.mxu0 0
    %624 = vmatpush1.bf16.msra.mxu0 %v496
    %625 = vmatprep.subr.bf16.mxu0 0
    %626 = vmatpush1.bf16.msra.mxu0 %v495
    %627 = vmatprep.subr.bf16.mxu0 0
    %628 = vmatpush1.bf16.msra.mxu0 %v494
    %629 = vmatprep.subr.bf16.mxu0 0
    %630 = vmatpush1.bf16.msra.mxu0 %v493
    %631 = vmatprep.subr.bf16.mxu0 0
    %632 = vmatpush1.bf16.msra.mxu0 %v492
    %633 = vmatprep.subr.bf16.mxu0 0
    %634 = vmatpush1.bf16.msra.mxu0 %v491
    %635 = vmatprep.subr.bf16.mxu0 0
    %636 = vmatpush2.bf16.msra.mxu0 %v506
    %637 = vmatprep.subr.bf16.mxu0 0
    %638 = vmatpush2.bf16.msra.mxu0 %v505
    %639 = vmatprep.subr.bf16.mxu0 0
    %640 = vmatpush2.bf16.msra.mxu0 %v504
    %641 = vmatprep.subr.bf16.mxu0 0
    %642 = vmatpush2.bf16.msra.mxu0 %v503
    %643 = vmatprep.subr.bf16.mxu0 0
    %644 = vmatpush2.bf16.msra.mxu0 %v502
    %645 = vmatprep.subr.bf16.mxu0 0
    %646 = vmatpush2.bf16.msra.mxu0 %v501
    %647 = vmatprep.subr.bf16.mxu0 0
    %648 = vmatpush2.bf16.msra.mxu0 %v500
    %649 = vmatprep.subr.bf16.mxu0 0
    %650 = vmatpush2.bf16.msra.mxu0 %v499
    %651 = vmatprep.mubr.bf16.mxu0 %v220
    %652 = vmatmul.mubr.bf16.gmra.mxu0 %v219
    %v653 = vpop.f32.mrf.mxu0
    %v654 = vadd.f32 %v193, %v653
    %v655 = vpop.f32.mrf.mxu0
    %v656 = vpop.f32.mrf.mxu0
    %v657 = vadd.f32 %v193, %v656
    %v658 = vpop.f32.mrf.mxu0
    %659 = vdwg.mxu0
    %660 = vmatprep.subr.bf16.mxu0 0
    %661 = vmatpush1.bf16.msra.mxu0 %v514
    %662 = vmatprep.subr.bf16.mxu0 0
    %663 = vmatpush1.bf16.msra.mxu0 %v513
    %664 = vmatprep.subr.bf16.mxu0 0
    %665 = vmatpush1.bf16.msra.mxu0 %v512
    %666 = vmatprep.subr.bf16.mxu0 0
    %667 = vmatpush1.bf16.msra.mxu0 %v511
    %668 = vmatprep.subr.bf16.mxu0 0
    %669 = vmatpush1.bf16.msra.mxu0 %v510
    %670 = vmatprep.subr.bf16.mxu0 0
    %671 = vmatpush1.bf16.msra.mxu0 %v509
    %672 = vmatprep.subr.bf16.mxu0 0
    %673 = vmatpush1.bf16.msra.mxu0 %v508
    %674 = vmatprep.subr.bf16.mxu0 0
    %675 = vmatpush1.bf16.msra.mxu0 %v507
    %676 = vmatprep.subr.bf16.mxu0 0
    %677 = vmatpush2.bf16.msra.mxu0 %v522
    %678 = vmatprep.subr.bf16.mxu0 0
    %679 = vmatpush2.bf16.msra.mxu0 %v521
    %680 = vmatprep.subr.bf16.mxu0 0
    %681 = vmatpush2.bf16.msra.mxu0 %v520
    %682 = vmatprep.subr.bf16.mxu0 0
    %683 = vmatpush2.bf16.msra.mxu0 %v519
    %684 = vmatprep.subr.bf16.mxu0 0
    %685 = vmatpush2.bf16.msra.mxu0 %v518
    %686 = vmatprep.subr.bf16.mxu0 0
    %687 = vmatpush2.bf16.msra.mxu0 %v517
    %688 = vmatprep.subr.bf16.mxu0 0
    %689 = vmatpush2.bf16.msra.mxu0 %v516
    %690 = vmatprep.subr.bf16.mxu0 0
    %691 = vmatpush2.bf16.msra.mxu0 %v515
    %692 = vmatprep.mubr.bf16.mxu0 %v222
    %693 = vmatmul.mubr.bf16.gmra.mxu0 %v221
    %v694 = vpop.f32.mrf.mxu0
    %v695 = vadd.f32 %v654, %v694
    %v696 = vpop.f32.mrf.mxu0
    %v697 = vpop.f32.mrf.mxu0
    %v698 = vadd.f32 %v657, %v697
    %v699 = vpop.f32.mrf.mxu0
    %700 = vdwg.mxu0
    %701 = vmatprep.subr.bf16.mxu0 0
    %702 = vmatpush1.bf16.msra.mxu0 %v530
    %703 = vmatprep.subr.bf16.mxu0 0
    %704 = vmatpush1.bf16.msra.mxu0 %v529
    %705 = vmatprep.subr.bf16.mxu0 0
    %706 = vmatpush1.bf16.msra.mxu0 %v528
    %707 = vmatprep.subr.bf16.mxu0 0
    %708 = vmatpush1.bf16.msra.mxu0 %v527
    %709 = vmatprep.subr.bf16.mxu0 0
    %710 = vmatpush1.bf16.msra.mxu0 %v526
    %711 = vmatprep.subr.bf16.mxu0 0
    %712 = vmatpush1.bf16.msra.mxu0 %v525
    %713 = vmatprep.subr.bf16.mxu0 0
    %714 = vmatpush1.bf16.msra.mxu0 %v524
    %715 = vmatprep.subr.bf16.mxu0 0
    %716 = vmatpush1.bf16.msra.mxu0 %v523
    %717 = vmatprep.subr.bf16.mxu0 0
    %718 = vmatpush2.bf16.msra.mxu0 %v538
    %719 = vmatprep.subr.bf16.mxu0 0
    %720 = vmatpush2.bf16.msra.mxu0 %v537
    %721 = vmatprep.subr.bf16.mxu0 0
    %722 = vmatpush2.bf16.msra.mxu0 %v536
    %723 = vmatprep.subr.bf16.mxu0 0
    %724 = vmatpush2.bf16.msra.mxu0 %v535
    %725 = vmatprep.subr.bf16.mxu0 0
    %726 = vmatpush2.bf16.msra.mxu0 %v534
    %727 = vmatprep.subr.bf16.mxu0 0
    %728 = vmatpush2.bf16.msra.mxu0 %v533
    %729 = vmatprep.subr.bf16.mxu0 0
    %730 = vmatpush2.bf16.msra.mxu0 %v532
    %731 = vmatprep.subr.bf16.mxu0 0
    %732 = vmatpush2.bf16.msra.mxu0 %v531
    %733 = vmatprep.mubr.bf16.mxu0 %v224
    %734 = vmatmul.mubr.bf16.gmra.mxu0 %v223
    %v735 = vpop.f32.mrf.mxu0
    %v736 = vadd.f32 %v695, %v735
    %v737 = vpop.f32.mrf.mxu0
    %v738 = vpop.f32.mrf.mxu0
    %v739 = vadd.f32 %v698, %v738
    %v740 = vpop.f32.mrf.mxu0
    %741 = vdwg.mxu0
    %742 = vmatprep.subr.bf16.mxu0 0
    %743 = vmatpush1.bf16.msra.mxu0 %v546
    %744 = vmatprep.subr.bf16.mxu0 0
    %745 = vmatpush1.bf16.msra.mxu0 %v545
    %746 = vmatprep.subr.bf16.mxu0 0
    %747 = vmatpush1.bf16.msra.mxu0 %v544
    %748 = vmatprep.subr.bf16.mxu0 0
    %749 = vmatpush1.bf16.msra.mxu0 %v543
    %750 = vmatprep.subr.bf16.mxu0 0
    %751 = vmatpush1.bf16.msra.mxu0 %v542
    %752 = vmatprep.subr.bf16.mxu0 0
    %753 = vmatpush1.bf16.msra.mxu0 %v541
    %754 = vmatprep.subr.bf16.mxu0 0
    %755 = vmatpush1.bf16.msra.mxu0 %v540
    %756 = vmatprep.subr.bf16.mxu0 0
    %757 = vmatpush1.bf16.msra.mxu0 %v539
    %758 = vmatprep.subr.bf16.mxu0 0
    %759 = vmatpush2.bf16.msra.mxu0 %v554
    %760 = vmatprep.subr.bf16.mxu0 0
    %761 = vmatpush2.bf16.msra.mxu0 %v553
    %762 = vmatprep.subr.bf16.mxu0 0
    %763 = vmatpush2.bf16.msra.mxu0 %v552
    %764 = vmatprep.subr.bf16.mxu0 0
    %765 = vmatpush2.bf16.msra.mxu0 %v551
    %766 = vmatprep.subr.bf16.mxu0 0
    %767 = vmatpush2.bf16.msra.mxu0 %v550
    %768 = vmatprep.subr.bf16.mxu0 0
    %769 = vmatpush2.bf16.msra.mxu0 %v549
    %770 = vmatprep.subr.bf16.mxu0 0
    %771 = vmatpush2.bf16.msra.mxu0 %v548
    %772 = vmatprep.subr.bf16.mxu0 0
    %773 = vmatpush2.bf16.msra.mxu0 %v547
    %774 = vmatprep.mubr.bf16.mxu0 %v226
    %775 = vmatmul.mubr.bf16.gmra.mxu0 %v225
    %v776 = vpop.f32.mrf.mxu0
    %v777 = vadd.f32 %v736, %v776
    %v778 = vpop.f32.mrf.mxu0
    %v779 = vpop.f32.mrf.mxu0
    %v780 = vadd.f32 %v739, %v779
    %v781 = vpop.f32.mrf.mxu0
    %782 = vdwg.mxu0
    %v783 = vstv %s51
    %v784 = vmul.f32 %v777, %v783
    %v785 = vmul.f32 %v780, %v783
    %786 = vst [vmem:[#allocation8] sm:$0xff] %v784
    %787 = vst [vmem:[#allocation8 + $0x8] sm:$0xff] %v785
    // Predicated region
    $region26: #{tpu_custom_call.1} parent=1 // pred_check
      _
    $region27: #{tpu_custom_call.1} parent=1 // pred_check_branch
      %789 = sbr.rel (0) target = $region29
    $region28: #{tpu_custom_call.1} parent=1 // pred_region
      %s791 = ssub.s32 256, 256
      %792 = vsyncadd [#allocation5], %s791
      %s793 = sshll.u32 [#allocation8], 4
      %s794 = int_to_ptr.vmem [resolvable:$true] %s793
      %799 = dma.vmem_to_hbm [thread:$0]  %s794, 256, %s4, [#allocation5], 128, 128, 8
    $region29: #{tpu_custom_call.1} parent=1 // pred_fallthru
      _
    // Predicated region
    $region30: #{tpu_custom_call.1} parent=1 // pred_check
      _
    $region31: #{tpu_custom_call.1} parent=1 // pred_check_branch
      %801 = sbr.rel (0) target = $region33
    $region32: #{tpu_custom_call.1} parent=1 // pred_region
      %802 = dma.done [#allocation5], 256
    $region33: #{tpu_custom_call.1} parent=1 // pred_fallthru
      _
    %803 = vsyncpa [#allocation4], 1
    %804 = vsyncpa [#allocation7], 1
    %805 = vsyncpa [#allocation5], 1

</llo_original>
